<compile_context>
chip_gen: v5e
topology: v5e:2x2
jax: 0.10.0
libtpu: 0.0.40
codegen_flags: <defaults>
</compile_context>

<pallas_src>
import math
import functools

import jax
import jax.numpy as jnp
from jax.experimental import pallas as pl
from jax.experimental.pallas import tpu as pltpu


def _round_up(x, m):
    return (x + m - 1) // m * m


def _pick_tile(dim_pad, prefer=(512, 256, 128)):
    """Largest preferred tile that evenly divides dim_pad (dim_pad % 128 == 0)."""
    for t in prefer:
        if t <= dim_pad and dim_pad % t == 0:
            return t
    return dim_pad


def _pad2d(a, rows, cols):
    r, c = a.shape
    if r == rows and c == cols:
        return a
    return jnp.pad(a, ((0, rows - r), (0, cols - c)))


# ---------------------------------------------------------------------------
# Kernels: K-tiled MXU matmul with f32 VMEM accumulator (with / without bias)
# ---------------------------------------------------------------------------
def _matmul_kernel(a_ref, b_ref, o_ref, acc_ref):
    k = pl.program_id(2)

    @pl.when(k == 0)
    def _():
        acc_ref[...] = jnp.zeros_like(acc_ref)

    acc_ref[...] += jnp.dot(
        a_ref[...], b_ref[...], preferred_element_type=jnp.float32
    )

    @pl.when(k == pl.num_programs(2) - 1)
    def _():
        o_ref[...] = acc_ref[...].astype(o_ref.dtype)


def _matmul_bias_kernel(a_ref, b_ref, bias_ref, o_ref, acc_ref):
    k = pl.program_id(2)

    @pl.when(k == 0)
    def _():
        acc_ref[...] = jnp.zeros_like(acc_ref)

    acc_ref[...] += jnp.dot(
        a_ref[...], b_ref[...], preferred_element_type=jnp.float32
    )

    @pl.when(k == pl.num_programs(2) - 1)
    def _():
        # bias add + final cast in f32 on the VPU (safe on v5e too)
        o_ref[...] = (acc_ref[...] + bias_ref[...]).astype(o_ref.dtype)


def _tiled_matmul(a, b, bias, out_dtype, *, tm, tn, tk):
    """out = a @ b (+ bias) with a 3-D tiled Pallas matmul. Shapes pre-padded."""
    M, K = a.shape
    K2, Nc = b.shape
    assert K == K2 and M % tm == 0 and Nc % tn == 0 and K % tk == 0

    grid = (M // tm, Nc // tn, K // tk)
    a_spec = pl.BlockSpec((tm, tk), lambda i, j, k: (i, k))
    b_spec = pl.BlockSpec((tk, tn), lambda i, j, k: (k, j))
    out_spec = pl.BlockSpec((tm, tn), lambda i, j, k: (i, j))
    scratch = [pltpu.VMEM((tm, tn), jnp.float32)]

    bytes_accessed = (
        M * K * a.dtype.itemsize
        + K * Nc * b.dtype.itemsize
        + M * Nc * jnp.dtype(out_dtype).itemsize
    )
    cost = pl.CostEstimate(
        flops=2 * M * K * Nc, transcendentals=0, bytes_accessed=bytes_accessed
    )
    params = pltpu.CompilerParams(
        dimension_semantics=("parallel", "parallel", "arbitrary"),
        vmem_limit_bytes=32 * 1024 * 1024,
    )
    out_shape = jax.ShapeDtypeStruct((M, Nc), out_dtype)

    if bias is None:
        return pl.pallas_call(
            _matmul_kernel,
            out_shape=out_shape,
            grid_spec=pltpu.PrefetchScalarGridSpec(
                num_scalar_prefetch=0,
                grid=grid,
                in_specs=[a_spec, b_spec],
                out_specs=out_spec,
                scratch_shapes=scratch,
            ),
            compiler_params=params,
            cost_estimate=cost,
        )(a, b)

    bias_spec = pl.BlockSpec((1, tn), lambda i, j, k: (0, j))
    return pl.pallas_call(
        _matmul_bias_kernel,
        out_shape=out_shape,
        grid_spec=pltpu.PrefetchScalarGridSpec(
            num_scalar_prefetch=0,
            grid=grid,
            in_specs=[a_spec, b_spec, bias_spec],
            out_specs=out_spec,
            scratch_shapes=scratch,
        ),
        compiler_params=params,
        cost_estimate=cost,
    )(a, b, bias)


# ---------------------------------------------------------------------------
# Wrapper: GraphConvolution.forward
# ---------------------------------------------------------------------------
@functools.partial(jax.jit, static_argnames=("tm", "tk", "tn", "compute_dtype"))
def graph_convolution(x, adj, weight, bias=None, *, tm=256, tk=256, tn=512,
                      compute_dtype=jnp.bfloat16):
    N, f_in = x.shape
    f_out = weight.shape[1]
    out_dtype = x.dtype

    # Clamp tiles for tiny graphs; pad rows / contraction dims independently
    # (zero rows/cols are mathematically inert for both matmuls).
    tm = min(tm, _round_up(N, 128))
    tk = min(tk, _round_up(N, 128))
    m_pad = _round_up(N, tm)            # output rows (pass 2)
    k_pad = _round_up(N, tk)            # adj cols == support rows (pass 2 contraction)
    fi_pad = _round_up(f_in, 128)
    fo_pad = _round_up(f_out, 128)
    tn = _pick_tile(fo_pad, prefer=(min(tn, fo_pad), 512, 256, 128))
    tki = _pick_tile(fi_pad)            # pass-1 contraction tile

    x_p = _pad2d(x.astype(compute_dtype), k_pad, fi_pad)
    w_p = _pad2d(weight.astype(compute_dtype), fi_pad, fo_pad)
    adj_p = _pad2d(adj.astype(compute_dtype), m_pad, k_pad)
    b_p = None
    if bias is not None:
        b_p = jnp.pad(bias.astype(jnp.float32), (0, fo_pad - f_out)).reshape(1, fo_pad)

    # pass 1: support = X @ W  (computed once; bf16 out feeds the MXU in pass 2)
    support = _tiled_matmul(x_p, w_p, None, compute_dtype, tm=tk, tn=tn, tk=tki)

    # pass 2: out = adj @ support (+ bias), K-tiled accumulation
    out_p = _tiled_matmul(adj_p, support, b_p, out_dtype, tm=tm, tn=tn, tk=tk)

    return out_p[:N, :f_out]


def init_gcn_params(key, in_features, out_features):
    """Matches GraphConvolution.intial_parameters: U(-stdv, stdv), stdv=1/sqrt(out)."""
    stdv = 1.0 / math.sqrt(out_features)
    kw, kb = jax.random.split(key)
    weight = jax.random.uniform(
        kw, (in_features, out_features), dtype=jnp.float32, minval=-stdv, maxval=stdv
    )
    bias = jax.random.uniform(
        kb, (out_features,), dtype=jnp.float32, minval=-stdv, maxval=stdv
    )
    return weight, bias


if __name__ == "__main__":
    key = jax.random.PRNGKey(0)
    k_x, k_adj, k_p = jax.random.split(key, 3)

    N = 256          # number of graph nodes
    F_IN = 64        # in_features
    F_OUT = 128      # out_features

    x = jax.random.normal(k_x, (N, F_IN), dtype=jnp.float32)

    # Dense, row-normalized adjacency (torch.spmm on a sparse adj == dense matmul here).
    adj_logits = jax.random.uniform(k_adj, (N, N), dtype=jnp.float32)
    adj = (adj_logits > 0.9).astype(jnp.float32) + jnp.eye(N, dtype=jnp.float32)
    adj = adj / jnp.sum(adj, axis=1, keepdims=True)

    weight, bias = init_gcn_params(k_p, F_IN, F_OUT)

    out = graph_convolution(x, adj, weight, bias, tm=256, tk=256)
    jax.block_until_ready(out)

    # reference check in plain JAX (f32); kernel uses bf16 MXU operands with
    # f32 accumulation, so tolerance is ~1e-2 relative.
    ref = adj @ (x @ weight) + bias[None, :]
    assert out.shape == (N, F_OUT)
    assert out.dtype == jnp.float32
    assert jnp.allclose(out, ref, atol=3e-2, rtol=3e-2), "mismatch vs reference"

    # also exercise the bias=None path once
    out_nb = graph_convolution(x, adj, weight, None, tm=256, tk=256)
    jax.block_until_ready(out_nb)
    ref_nb = adj @ (x @ weight)
    assert jnp.allclose(out_nb, ref_nb, atol=3e-2, rtol=3e-2), "mismatch (no bias)"

    print("KERNEL_OK")
</pallas_src>

<mosaic_0001>
module attributes {stable_mosaic.version = 11 : i64} {
  func.func @_matmul_kernel(%arg0: i32, %arg1: i32, %arg2: i32, %arg3: memref<256x128xbf16, #tpu.memory_space<vmem>>, %arg4: memref<128x128xbf16, #tpu.memory_space<vmem>>, %arg5: memref<256x128xbf16, #tpu.memory_space<vmem>>, %arg6: memref<256x128xf32, #tpu.memory_space<vmem>>) attributes {dimension_semantics = [#tpu.dimension_semantics<parallel>, #tpu.dimension_semantics<parallel>, #tpu.dimension_semantics<arbitrary>], iteration_bounds = array<i64: 1, 1, 1>, scalar_prefetch = 0 : i64, scratch_operands = 1 : i64, tpu.core_type = #tpu.core_type<tc>, window_params = [{transform_indices = @transform_0, window_bounds = array<i64: 256, 128>}, {transform_indices = @transform_1, window_bounds = array<i64: 128, 128>}, {transform_indices = @transform_2, window_bounds = array<i64: 256, 128>}]} {
    %c0_i32 = arith.constant 0 : i32
    %0 = arith.cmpi eq, %arg2, %c0_i32 : i32
    %1 = arith.extui %0 : i1 to i32
    %c0_i32_0 = arith.constant 0 : i32
    %2 = arith.cmpi ne, %1, %c0_i32_0 : i32
    scf.if %2 {
      %cst_10 = arith.constant 0.000000e+00 : f32
      %12 = vector.broadcast %cst_10 : f32 to vector<256x128xf32>
      %c0_11 = arith.constant 0 : index
      %c0_12 = arith.constant 0 : index
      %13 = vector.load %arg6[%c0_11, %c0_12] : memref<256x128xf32, #tpu.memory_space<vmem>>, vector<256x128xf32>
      tpu.vector_store %arg6[%c0_11, %c0_12], %12 {strides = array<i32>} : memref<256x128xf32, #tpu.memory_space<vmem>>, vector<256x128xf32>,
    } else {
    }
    %c0 = arith.constant 0 : index
    %c0_1 = arith.constant 0 : index
    %3 = vector.load %arg6[%c0, %c0_1] : memref<256x128xf32, #tpu.memory_space<vmem>>, vector<256x128xf32>
    %c0_2 = arith.constant 0 : index
    %c0_3 = arith.constant 0 : index
    %4 = vector.load %arg3[%c0_2, %c0_3] : memref<256x128xbf16, #tpu.memory_space<vmem>>, vector<256x128xbf16>
    %c0_4 = arith.constant 0 : index
    %c0_5 = arith.constant 0 : index
    %5 = vector.load %arg4[%c0_4, %c0_5] : memref<128x128xbf16, #tpu.memory_space<vmem>>, vector<128x128xbf16>
    %cst = arith.constant dense<0.000000e+00> : vector<256x128xf32>
    %6 = tpu.matmul %4, %5, %cst {dimension_numbers = #tpu.dot_dimension_numbers<[1], [0], [0], [1], [0, 0, 1, 1], [], []>} : vector<256x128xbf16>, vector<128x128xbf16>, vector<256x128xf32> -> vector<256x128xf32>
    %7 = arith.addf %3, %6 : vector<256x128xf32>
    %c0_6 = arith.constant 0 : index
    %c0_7 = arith.constant 0 : index
    %8 = vector.load %arg6[%c0_6, %c0_7] : memref<256x128xf32, #tpu.memory_space<vmem>>, vector<256x128xf32>
    tpu.vector_store %arg6[%c0_6, %c0_7], %7 {strides = array<i32>} : memref<256x128xf32, #tpu.memory_space<vmem>>, vector<256x128xf32>,
    %c0_i32_8 = arith.constant 0 : i32
    %9 = arith.cmpi eq, %arg2, %c0_i32_8 : i32
    %10 = arith.extui %9 : i1 to i32
    %c0_i32_9 = arith.constant 0 : i32
    %11 = arith.cmpi ne, %10, %c0_i32_9 : i32
    scf.if %11 {
      %c0_10 = arith.constant 0 : index
      %c0_11 = arith.constant 0 : index
      %12 = vector.load %arg6[%c0_10, %c0_11] : memref<256x128xf32, #tpu.memory_space<vmem>>, vector<256x128xf32>
      %13 = arith.truncf %12 : vector<256x128xf32> to vector<256x128xbf16>
      %c0_12 = arith.constant 0 : index
      %c0_13 = arith.constant 0 : index
      %14 = vector.load %arg5[%c0_12, %c0_13] : memref<256x128xbf16, #tpu.memory_space<vmem>>, vector<256x128xbf16>
      tpu.vector_store %arg5[%c0_12, %c0_13], %13 {strides = array<i32>} : memref<256x128xbf16, #tpu.memory_space<vmem>>, vector<256x128xbf16>,
    } else {
    }
    return
  }
  func.func @transform_0(%arg0: i32, %arg1: i32, %arg2: i32) -> (i32, i32) {
    %c0_i32 = arith.constant 0 : i32
    return %arg0, %arg2 : i32, i32
  }
  func.func @transform_1(%arg0: i32, %arg1: i32, %arg2: i32) -> (i32, i32) {
    %c0_i32 = arith.constant 0 : i32
    return %arg2, %arg1 : i32, i32
  }
  func.func @transform_2(%arg0: i32, %arg1: i32, %arg2: i32) -> (i32, i32) {
    %c0_i32 = arith.constant 0 : i32
    return %arg0, %arg1 : i32, i32
  }
}

module attributes {stable_mosaic.version = 11 : i64} {
  func.func @_matmul_bias_kernel(%arg0: i32, %arg1: i32, %arg2: i32, %arg3: memref<256x256xbf16, #tpu.memory_space<vmem>>, %arg4: memref<256x128xbf16, #tpu.memory_space<vmem>>, %arg5: memref<1x128xf32, #tpu.memory_space<vmem>>, %arg6: memref<256x128xf32, #tpu.memory_space<vmem>>, %arg7: memref<256x128xf32, #tpu.memory_space<vmem>>) attributes {dimension_semantics = [#tpu.dimension_semantics<parallel>, #tpu.dimension_semantics<parallel>, #tpu.dimension_semantics<arbitrary>], iteration_bounds = array<i64: 1, 1, 1>, scalar_prefetch = 0 : i64, scratch_operands = 1 : i64, tpu.core_type = #tpu.core_type<tc>, window_params = [{transform_indices = @transform_0, window_bounds = array<i64: 256, 256>}, {transform_indices = @transform_1, window_bounds = array<i64: 256, 128>}, {transform_indices = @transform_2, window_bounds = array<i64: 1, 128>}, {transform_indices = @transform_3, window_bounds = array<i64: 256, 128>}]} {
    %c0_i32 = arith.constant 0 : i32
    %0 = arith.cmpi eq, %arg2, %c0_i32 : i32
    %1 = arith.extui %0 : i1 to i32
    %c0_i32_0 = arith.constant 0 : i32
    %2 = arith.cmpi ne, %1, %c0_i32_0 : i32
    scf.if %2 {
      %cst_10 = arith.constant 0.000000e+00 : f32
      %12 = vector.broadcast %cst_10 : f32 to vector<256x128xf32>
      %c0_11 = arith.constant 0 : index
      %c0_12 = arith.constant 0 : index
      %13 = vector.load %arg7[%c0_11, %c0_12] : memref<256x128xf32, #tpu.memory_space<vmem>>, vector<256x128xf32>
      tpu.vector_store %arg7[%c0_11, %c0_12], %12 {strides = array<i32>} : memref<256x128xf32, #tpu.memory_space<vmem>>, vector<256x128xf32>,
    } else {
    }
    %c0 = arith.constant 0 : index
    %c0_1 = arith.constant 0 : index
    %3 = vector.load %arg7[%c0, %c0_1] : memref<256x128xf32, #tpu.memory_space<vmem>>, vector<256x128xf32>
    %c0_2 = arith.constant 0 : index
    %c0_3 = arith.constant 0 : index
    %4 = vector.load %arg3[%c0_2, %c0_3] : memref<256x256xbf16, #tpu.memory_space<vmem>>, vector<256x256xbf16>
    %c0_4 = arith.constant 0 : index
    %c0_5 = arith.constant 0 : index
    %5 = vector.load %arg4[%c0_4, %c0_5] : memref<256x128xbf16, #tpu.memory_space<vmem>>, vector<256x128xbf16>
    %cst = arith.constant dense<0.000000e+00> : vector<256x128xf32>
    %6 = tpu.matmul %4, %5, %cst {dimension_numbers = #tpu.dot_dimension_numbers<[1], [0], [0], [1], [0, 0, 1, 1], [], []>} : vector<256x256xbf16>, vector<256x128xbf16>, vector<256x128xf32> -> vector<256x128xf32>
    %7 = arith.addf %3, %6 : vector<256x128xf32>
    %c0_6 = arith.constant 0 : index
    %c0_7 = arith.constant 0 : index
    %8 = vector.load %arg7[%c0_6, %c0_7] : memref<256x128xf32, #tpu.memory_space<vmem>>, vector<256x128xf32>
    tpu.vector_store %arg7[%c0_6, %c0_7], %7 {strides = array<i32>} : memref<256x128xf32, #tpu.memory_space<vmem>>, vector<256x128xf32>,
    %c0_i32_8 = arith.constant 0 : i32
    %9 = arith.cmpi eq, %arg2, %c0_i32_8 : i32
    %10 = arith.extui %9 : i1 to i32
    %c0_i32_9 = arith.constant 0 : i32
    %11 = arith.cmpi ne, %10, %c0_i32_9 : i32
    scf.if %11 {
      %c0_10 = arith.constant 0 : index
      %c0_11 = arith.constant 0 : index
      %12 = vector.load %arg7[%c0_10, %c0_11] : memref<256x128xf32, #tpu.memory_space<vmem>>, vector<256x128xf32>
      %c0_12 = arith.constant 0 : index
      %c0_13 = arith.constant 0 : index
      %13 = vector.load %arg5[%c0_12, %c0_13] : memref<1x128xf32, #tpu.memory_space<vmem>>, vector<1x128xf32>
      %14 = vector.broadcast %13 : vector<1x128xf32> to vector<256x128xf32>
      %15 = arith.addf %12, %14 : vector<256x128xf32>
      %c0_14 = arith.constant 0 : index
      %c0_15 = arith.constant 0 : index
      %16 = vector.load %arg6[%c0_14, %c0_15] : memref<256x128xf32, #tpu.memory_space<vmem>>, vector<256x128xf32>
      tpu.vector_store %arg6[%c0_14, %c0_15], %15 {strides = array<i32>} : memref<256x128xf32, #tpu.memory_space<vmem>>, vector<256x128xf32>,
    } else {
    }
    return
  }
  func.func @transform_0(%arg0: i32, %arg1: i32, %arg2: i32) -> (i32, i32) {
    %c0_i32 = arith.constant 0 : i32
    return %arg0, %arg2 : i32, i32
  }
  func.func @transform_1(%arg0: i32, %arg1: i32, %arg2: i32) -> (i32, i32) {
    %c0_i32 = arith.constant 0 : i32
    return %arg2, %arg1 : i32, i32
  }
  func.func @transform_2(%arg0: i32, %arg1: i32, %arg2: i32) -> (i32, i32) {
    %c0_i32 = arith.constant 0 : i32
    %c0_i32_0 = arith.constant 0 : i32
    return %c0_i32, %arg1 : i32, i32
  }
  func.func @transform_3(%arg0: i32, %arg1: i32, %arg2: i32) -> (i32, i32) {
    %c0_i32 = arith.constant 0 : i32
    return %arg0, %arg1 : i32, i32
  }
}

</mosaic_0001>

<llo_original>
// kernel: graph_convolution.3
$region0: #{graph_convolution.3}
  #allocation0 [shape = 'u32[]', space=smem, size = 0x4, offset = 0x4, fixed_abs, tag = 'smem constant byte address 0x4 - core index']
  #allocation1 [shape = 'u32[72,128]{1,0:T(1,128)}', space=vmem, size = 0x9000, scoped, tag = 'internal scratch']
  #allocation2 [shape = 'f32[256,128]{1,0:T(8,128)}', space=vmem, size = 0x20000, scoped, tag = 'scratch operand']
  %s0 = inlined_call_operand.vmem [shape: bf16[256,256], index: 0, kind: input, shape index: {}]
  %s1 = inlined_call_operand.vmem [shape: bf16[256,128], index: 1, kind: input, shape index: {}]
  %s2 = inlined_call_operand.vmem [shape: f32[1,128], index: 2, kind: input, shape index: {}]
  %s3 = inlined_call_operand.hbm [shape: f32[256,128], index: 3, kind: output, shape index: {}]
  %s4 = sld [smem:[#allocation0]]
  $region30: #{graph_convolution.3} parent=0
    _
  %s6 = ssub.s32 1, %s4
  %s7 = scalar_select 0, %s6, %s4
  $region1: #{graph_convolution.3} parent=0
    #allocation3 [shape = 'u8[131072]{0}', space=vmem, size = 0x20000, scoped, tag = 'output window, operand 0, single buffered']
    #allocation4 [shape = 's32[1]{0}', space=sflag, size = 0x4, scoped, tag = 'scoped memory for graph_convolution.3']
    %8 = vsyncpa [#allocation4], 0
    // Predicated region
    $region2: #{graph_convolution.3} parent=1 // pred_check
      _
    $region3: #{graph_convolution.3} parent=1 // pred_check_branch
      %10 = sbr.rel (0) target = $region5
    $region4: #{graph_convolution.3} parent=1 // pred_region
      _
    $region5: #{graph_convolution.3} parent=1 // pred_fallthru
      _
    // Predicated region
    $region6: #{graph_convolution.3} parent=1 // pred_check
      _
    $region7: #{graph_convolution.3} parent=1 // pred_check_branch
      %12 = sbr.rel (0) target = $region9
    $region8: #{graph_convolution.3} parent=1 // pred_region
      _
    $region9: #{graph_convolution.3} parent=1 // pred_fallthru
      _
    // Predicated region
    $region10: #{graph_convolution.3} parent=1 // pred_check
      _
    $region11: #{graph_convolution.3} parent=1 // pred_check_branch
      %14 = sbr.rel (0) target = $region13
    $region12: #{graph_convolution.3} parent=1 // pred_region
      _
    $region13: #{graph_convolution.3} parent=1 // pred_fallthru
      _
    %p15 = scmp.eq.s32.totalorder 0, 0
    // Predicated region
    $region14: #{graph_convolution.3} parent=1 // pred_check
      %p16 = pneg %p15
    $region15: #{graph_convolution.3} parent=1 // pred_check_branch
      %18 = sbr.rel (%p16) target = $region17
    $region16: #{graph_convolution.3} parent=1 // pred_region
      %19 = vst [vmem:[#allocation2] sm:$0xff] 0.0
      %20 = vst [vmem:[#allocation2 + $0x8] sm:$0xff] 0.0
      %21 = vst [vmem:[#allocation2 + $0x10] sm:$0xff] 0.0
      %22 = vst [vmem:[#allocation2 + $0x18] sm:$0xff] 0.0
      %23 = vst [vmem:[#allocation2 + $0x20] sm:$0xff] 0.0
      %24 = vst [vmem:[#allocation2 + $0x28] sm:$0xff] 0.0
      %25 = vst [vmem:[#allocation2 + $0x30] sm:$0xff] 0.0
      %26 = vst [vmem:[#allocation2 + $0x38] sm:$0xff] 0.0
      %27 = vst [vmem:[#allocation2 + $0x40] sm:$0xff] 0.0
      %28 = vst [vmem:[#allocation2 + $0x48] sm:$0xff] 0.0
      %29 = vst [vmem:[#allocation2 + $0x50] sm:$0xff] 0.0
      %30 = vst [vmem:[#allocation2 + $0x58] sm:$0xff] 0.0
      %31 = vst [vmem:[#allocation2 + $0x60] sm:$0xff] 0.0
      %32 = vst [vmem:[#allocation2 + $0x68] sm:$0xff] 0.0
      %33 = vst [vmem:[#allocation2 + $0x70] sm:$0xff] 0.0
      %34 = vst [vmem:[#allocation2 + $0x78] sm:$0xff] 0.0
      %35 = vst [vmem:[#allocation2 + $0x80] sm:$0xff] 0.0
      %36 = vst [vmem:[#allocation2 + $0x88] sm:$0xff] 0.0
      %37 = vst [vmem:[#allocation2 + $0x90] sm:$0xff] 0.0
      %38 = vst [vmem:[#allocation2 + $0x98] sm:$0xff] 0.0
      %39 = vst [vmem:[#allocation2 + $0xa0] sm:$0xff] 0.0
      %40 = vst [vmem:[#allocation2 + $0xa8] sm:$0xff] 0.0
      %41 = vst [vmem:[#allocation2 + $0xb0] sm:$0xff] 0.0
      %42 = vst [vmem:[#allocation2 + $0xb8] sm:$0xff] 0.0
      %43 = vst [vmem:[#allocation2 + $0xc0] sm:$0xff] 0.0
      %44 = vst [vmem:[#allocation2 + $0xc8] sm:$0xff] 0.0
      %45 = vst [vmem:[#allocation2 + $0xd0] sm:$0xff] 0.0
      %46 = vst [vmem:[#allocation2 + $0xd8] sm:$0xff] 0.0
      %47 = vst [vmem:[#allocation2 + $0xe0] sm:$0xff] 0.0
      %48 = vst [vmem:[#allocation2 + $0xe8] sm:$0xff] 0.0
      %49 = vst [vmem:[#allocation2 + $0xf0] sm:$0xff] 0.0
      %50 = vst [vmem:[#allocation2 + $0xf8] sm:$0xff] 0.0
    $region17: #{graph_convolution.3} parent=1 // pred_fallthru
      _
    %v51 = vld [vmem:[#allocation2] sm:$0xff]
    %v52 = vld [vmem:[#allocation2 + $0x8] sm:$0xff]
    %v53 = vld [vmem:[#allocation2 + $0x10] sm:$0xff]
    %v54 = vld [vmem:[#allocation2 + $0x18] sm:$0xff]
    %v55 = vld [vmem:[#allocation2 + $0x20] sm:$0xff]
    %v56 = vld [vmem:[#allocation2 + $0x28] sm:$0xff]
    %v57 = vld [vmem:[#allocation2 + $0x30] sm:$0xff]
    %v58 = vld [vmem:[#allocation2 + $0x38] sm:$0xff]
    %v59 = vld [vmem:[#allocation2 + $0x40] sm:$0xff]
    %v60 = vld [vmem:[#allocation2 + $0x48] sm:$0xff]
    %v61 = vld [vmem:[#allocation2 + $0x50] sm:$0xff]
    %v62 = vld [vmem:[#allocation2 + $0x58] sm:$0xff]
    %v63 = vld [vmem:[#allocation2 + $0x60] sm:$0xff]
    %v64 = vld [vmem:[#allocation2 + $0x68] sm:$0xff]
    %v65 = vld [vmem:[#allocation2 + $0x70] sm:$0xff]
    %v66 = vld [vmem:[#allocation2 + $0x78] sm:$0xff]
    %v67 = vld [vmem:[#allocation2 + $0x80] sm:$0xff]
    %v68 = vld [vmem:[#allocation2 + $0x88] sm:$0xff]
    %v69 = vld [vmem:[#allocation2 + $0x90] sm:$0xff]
    %v70 = vld [vmem:[#allocation2 + $0x98] sm:$0xff]
    %v71 = vld [vmem:[#allocation2 + $0xa0] sm:$0xff]
    %v72 = vld [vmem:[#allocation2 + $0xa8] sm:$0xff]
    %v73 = vld [vmem:[#allocation2 + $0xb0] sm:$0xff]
    %v74 = vld [vmem:[#allocation2 + $0xb8] sm:$0xff]
    %v75 = vld [vmem:[#allocation2 + $0xc0] sm:$0xff]
    %v76 = vld [vmem:[#allocation2 + $0xc8] sm:$0xff]
    %v77 = vld [vmem:[#allocation2 + $0xd0] sm:$0xff]
    %v78 = vld [vmem:[#allocation2 + $0xd8] sm:$0xff]
    %v79 = vld [vmem:[#allocation2 + $0xe0] sm:$0xff]
    %v80 = vld [vmem:[#allocation2 + $0xe8] sm:$0xff]
    %v81 = vld [vmem:[#allocation2 + $0xf0] sm:$0xff]
    %v82 = vld [vmem:[#allocation2 + $0xf8] sm:$0xff]
    %v83 = vld [vmem:[%s0] sm:$0xff]
    %v84 = vld [vmem:[%s0 + $0x8] sm:$0xff]
    %v85 = vld [vmem:[%s0 + $0x10] sm:$0xff]
    %v86 = vld [vmem:[%s0 + $0x18] sm:$0xff]
    %v87 = vld [vmem:[%s0 + $0x20] sm:$0xff]
    %v88 = vld [vmem:[%s0 + $0x28] sm:$0xff]
    %v89 = vld [vmem:[%s0 + $0x30] sm:$0xff]
    %v90 = vld [vmem:[%s0 + $0x38] sm:$0xff]
    %v91 = vld [vmem:[%s0 + $0x40] sm:$0xff]
    %v92 = vld [vmem:[%s0 + $0x48] sm:$0xff]
    %v93 = vld [vmem:[%s0 + $0x50] sm:$0xff]
    %v94 = vld [vmem:[%s0 + $0x58] sm:$0xff]
    %v95 = vld [vmem:[%s0 + $0x60] sm:$0xff]
    %v96 = vld [vmem:[%s0 + $0x68] sm:$0xff]
    %v97 = vld [vmem:[%s0 + $0x70] sm:$0xff]
    %v98 = vld [vmem:[%s0 + $0x78] sm:$0xff]
    %v99 = vld [vmem:[%s0 + $0x80] sm:$0xff]
    %v100 = vld [vmem:[%s0 + $0x88] sm:$0xff]
    %v101 = vld [vmem:[%s0 + $0x90] sm:$0xff]
    %v102 = vld [vmem:[%s0 + $0x98] sm:$0xff]
    %v103 = vld [vmem:[%s0 + $0xa0] sm:$0xff]
    %v104 = vld [vmem:[%s0 + $0xa8] sm:$0xff]
    %v105 = vld [vmem:[%s0 + $0xb0] sm:$0xff]
    %v106 = vld [vmem:[%s0 + $0xb8] sm:$0xff]
    %v107 = vld [vmem:[%s0 + $0xc0] sm:$0xff]
    %v108 = vld [vmem:[%s0 + $0xc8] sm:$0xff]
    %v109 = vld [vmem:[%s0 + $0xd0] sm:$0xff]
    %v110 = vld [vmem:[%s0 + $0xd8] sm:$0xff]
    %v111 = vld [vmem:[%s0 + $0xe0] sm:$0xff]
    %v112 = vld [vmem:[%s0 + $0xe8] sm:$0xff]
    %v113 = vld [vmem:[%s0 + $0xf0] sm:$0xff]
    %v114 = vld [vmem:[%s0 + $0xf8] sm:$0xff]
    %v115 = vld [vmem:[%s1] sm:$0xf]
    %v116 = vld [vmem:[%s1 + $0x4] sm:$0xf]
    %v117 = vld [vmem:[%s1 + $0x8] sm:$0xf]
    %v118 = vld [vmem:[%s1 + $0xc] sm:$0xf]
    %v119 = vld [vmem:[%s1 + $0x10] sm:$0xf]
    %v120 = vld [vmem:[%s1 + $0x14] sm:$0xf]
    %v121 = vld [vmem:[%s1 + $0x18] sm:$0xf]
    %v122 = vld [vmem:[%s1 + $0x1c] sm:$0xf]
    %v123 = vld [vmem:[%s1 + $0x20] sm:$0xf]
    %v124 = vld [vmem:[%s1 + $0x24] sm:$0xf]
    %v125 = vld [vmem:[%s1 + $0x28] sm:$0xf]
    %v126 = vld [vmem:[%s1 + $0x2c] sm:$0xf]
    %v127 = vld [vmem:[%s1 + $0x30] sm:$0xf]
    %v128 = vld [vmem:[%s1 + $0x34] sm:$0xf]
    %v129 = vld [vmem:[%s1 + $0x38] sm:$0xf]
    %v130 = vld [vmem:[%s1 + $0x3c] sm:$0xf]
    %v131 = vld [vmem:[%s1 + $0x40] sm:$0xf]
    %v132 = vld [vmem:[%s1 + $0x44] sm:$0xf]
    %v133 = vld [vmem:[%s1 + $0x48] sm:$0xf]
    %v134 = vld [vmem:[%s1 + $0x4c] sm:$0xf]
    %v135 = vld [vmem:[%s1 + $0x50] sm:$0xf]
    %v136 = vld [vmem:[%s1 + $0x54] sm:$0xf]
    %v137 = vld [vmem:[%s1 + $0x58] sm:$0xf]
    %v138 = vld [vmem:[%s1 + $0x5c] sm:$0xf]
    %v139 = vld [vmem:[%s1 + $0x60] sm:$0xf]
    %v140 = vld [vmem:[%s1 + $0x64] sm:$0xf]
    %v141 = vld [vmem:[%s1 + $0x68] sm:$0xf]
    %v142 = vld [vmem:[%s1 + $0x6c] sm:$0xf]
    %v143 = vld [vmem:[%s1 + $0x70] sm:$0xf]
    %v144 = vld [vmem:[%s1 + $0x74] sm:$0xf]
    %v145 = vld [vmem:[%s1 + $0x78] sm:$0xf]
    %v146 = vld [vmem:[%s1 + $0x7c] sm:$0xf]
    %v179 = vunpack.c.l.b16 %v83
    %v180 = vunpack.c.h.b16 %v83
    %v181 = vunpack.c.l.b16 %v84
    %v182 = vunpack.c.h.b16 %v84
    %v183 = vunpack.c.l.b16 %v85
    %v184 = vunpack.c.h.b16 %v85
    %v185 = vunpack.c.l.b16 %v86
    %v186 = vunpack.c.h.b16 %v86
    %v187 = vunpack.c.l.b16 %v87
    %v188 = vunpack.c.h.b16 %v87
    %v189 = vunpack.c.l.b16 %v88
    %v190 = vunpack.c.h.b16 %v88
    %v191 = vunpack.c.l.b16 %v89
    %v192 = vunpack.c.h.b16 %v89
    %v193 = vunpack.c.l.b16 %v90
    %v194 = vunpack.c.h.b16 %v90
    %v195 = vunpack.c.l.b16 %v91
    %v196 = vunpack.c.h.b16 %v91
    %v197 = vunpack.c.l.b16 %v92
    %v198 = vunpack.c.h.b16 %v92
    %v199 = vunpack.c.l.b16 %v93
    %v200 = vunpack.c.h.b16 %v93
    %v201 = vunpack.c.l.b16 %v94
    %v202 = vunpack.c.h.b16 %v94
    %v203 = vunpack.c.l.b16 %v95
    %v204 = vunpack.c.h.b16 %v95
    %v205 = vunpack.c.l.b16 %v96
    %v206 = vunpack.c.h.b16 %v96
    %v207 = vunpack.c.l.b16 %v97
    %v208 = vunpack.c.h.b16 %v97
    %v209 = vunpack.c.l.b16 %v98
    %v210 = vunpack.c.h.b16 %v98
    %v211 = vunpack.c.l.b16 %v99
    %v212 = vunpack.c.h.b16 %v99
    %v213 = vunpack.c.l.b16 %v100
    %v214 = vunpack.c.h.b16 %v100
    %v215 = vunpack.c.l.b16 %v101
    %v216 = vunpack.c.h.b16 %v101
    %v217 = vunpack.c.l.b16 %v102
    %v218 = vunpack.c.h.b16 %v102
    %v219 = vunpack.c.l.b16 %v103
    %v220 = vunpack.c.h.b16 %v103
    %v221 = vunpack.c.l.b16 %v104
    %v222 = vunpack.c.h.b16 %v104
    %v223 = vunpack.c.l.b16 %v105
    %v224 = vunpack.c.h.b16 %v105
    %v225 = vunpack.c.l.b16 %v106
    %v226 = vunpack.c.h.b16 %v106
    %v227 = vunpack.c.l.b16 %v107
    %v228 = vunpack.c.h.b16 %v107
    %v229 = vunpack.c.l.b16 %v108
    %v230 = vunpack.c.h.b16 %v108
    %v231 = vunpack.c.l.b16 %v109
    %v232 = vunpack.c.h.b16 %v109
    %v233 = vunpack.c.l.b16 %v110
    %v234 = vunpack.c.h.b16 %v110
    %v235 = vunpack.c.l.b16 %v111
    %v236 = vunpack.c.h.b16 %v111
    %v237 = vunpack.c.l.b16 %v112
    %v238 = vunpack.c.h.b16 %v112
    %v239 = vunpack.c.l.b16 %v113
    %v240 = vunpack.c.h.b16 %v113
    %v241 = vunpack.c.l.b16 %v114
    %v242 = vunpack.c.h.b16 %v114
    %v243 = vpack.c.b16 %v181, %v179
    %v244 = vpack.c.b16 %v182, %v180
    %v245 = vpack.c.b16 %v185, %v183
    %v246 = vpack.c.b16 %v186, %v184
    %v247 = vpack.c.b16 %v189, %v187
    %v248 = vpack.c.b16 %v190, %v188
    %v249 = vpack.c.b16 %v193, %v191
    %v250 = vpack.c.b16 %v194, %v192
    %v251 = vpack.c.b16 %v197, %v195
    %v252 = vpack.c.b16 %v198, %v196
    %v253 = vpack.c.b16 %v201, %v199
    %v254 = vpack.c.b16 %v202, %v200
    %v255 = vpack.c.b16 %v205, %v203
    %v256 = vpack.c.b16 %v206, %v204
    %v257 = vpack.c.b16 %v209, %v207
    %v258 = vpack.c.b16 %v210, %v208
    %v259 = vpack.c.b16 %v213, %v211
    %v260 = vpack.c.b16 %v214, %v212
    %v261 = vpack.c.b16 %v217, %v215
    %v262 = vpack.c.b16 %v218, %v216
    %v263 = vpack.c.b16 %v221, %v219
    %v264 = vpack.c.b16 %v222, %v220
    %v265 = vpack.c.b16 %v225, %v223
    %v266 = vpack.c.b16 %v226, %v224
    %v267 = vpack.c.b16 %v229, %v227
    %v268 = vpack.c.b16 %v230, %v228
    %v269 = vpack.c.b16 %v233, %v231
    %v270 = vpack.c.b16 %v234, %v232
    %v271 = vpack.c.b16 %v237, %v235
    %v272 = vpack.c.b16 %v238, %v236
    %v273 = vpack.c.b16 %v241, %v239
    %v274 = vpack.c.b16 %v242, %v240
    %v339 = vunpack.c.l.b16 %v115
    %v340 = vunpack.c.l.b16 %v116
    %v341 = vunpack.c.l.b16 %v117
    %v342 = vunpack.c.l.b16 %v118
    %v343 = vunpack.c.l.b16 %v119
    %v344 = vunpack.c.l.b16 %v120
    %v345 = vunpack.c.l.b16 %v121
    %v346 = vunpack.c.l.b16 %v122
    %v347 = vunpack.c.l.b16 %v123
    %v348 = vunpack.c.l.b16 %v124
    %v349 = vunpack.c.l.b16 %v125
    %v350 = vunpack.c.l.b16 %v126
    %v351 = vunpack.c.l.b16 %v127
    %v352 = vunpack.c.l.b16 %v128
    %v353 = vunpack.c.l.b16 %v129
    %v354 = vunpack.c.l.b16 %v130
    %v355 = vunpack.c.l.b16 %v131
    %v356 = vunpack.c.l.b16 %v132
    %v357 = vunpack.c.l.b16 %v133
    %v358 = vunpack.c.l.b16 %v134
    %v359 = vunpack.c.l.b16 %v135
    %v360 = vunpack.c.l.b16 %v136
    %v361 = vunpack.c.l.b16 %v137
    %v362 = vunpack.c.l.b16 %v138
    %v363 = vunpack.c.l.b16 %v139
    %v364 = vunpack.c.l.b16 %v140
    %v365 = vunpack.c.l.b16 %v141
    %v366 = vunpack.c.l.b16 %v142
    %v367 = vunpack.c.l.b16 %v143
    %v368 = vunpack.c.l.b16 %v144
    %v369 = vunpack.c.l.b16 %v145
    %v370 = vunpack.c.l.b16 %v146
    %v371 = vpack.c.b16 %v340, %v339
    %v372 = vpack.c.b16 %v342, %v341
    %v373 = vpack.c.b16 %v344, %v343
    %v374 = vpack.c.b16 %v346, %v345
    %v375 = vpack.c.b16 %v348, %v347
    %v376 = vpack.c.b16 %v350, %v349
    %v377 = vpack.c.b16 %v352, %v351
    %v378 = vpack.c.b16 %v354, %v353
    %v379 = vpack.c.b16 %v356, %v355
    %v380 = vpack.c.b16 %v358, %v357
    %v381 = vpack.c.b16 %v360, %v359
    %v382 = vpack.c.b16 %v362, %v361
    %v383 = vpack.c.b16 %v364, %v363
    %v384 = vpack.c.b16 %v366, %v365
    %v385 = vpack.c.b16 %v368, %v367
    %v386 = vpack.c.b16 %v370, %v369
    %403 = vmatpush.bf16.msra.mxu0 %v378
    %404 = vmatpush.bf16.msra.mxu0 %v377
    %405 = vmatpush.bf16.msra.mxu0 %v376
    %406 = vmatpush.bf16.msra.mxu0 %v375
    %407 = vmatpush.bf16.msra.mxu0 %v374
    %408 = vmatpush.bf16.msra.mxu0 %v373
    %409 = vmatpush.bf16.msra.mxu0 %v372
    %410 = vmatpush.bf16.msra.mxu0 %v371
    %411 = vmatmul.bf16.gmra.mxu0 %v243
    %v412 = vpop.f32.mrf.mxu0
    %v413 = vadd.f32 0.0, %v412
    %v414 = vpop.f32.mrf.mxu0
    %v415 = vadd.f32 0.0, %v414
    %416 = vmatmul.bf16.gmra.mxu0 %v245
    %v417 = vpop.f32.mrf.mxu0
    %v418 = vadd.f32 0.0, %v417
    %v419 = vpop.f32.mrf.mxu0
    %v420 = vadd.f32 0.0, %v419
    %421 = vmatmul.bf16.gmra.mxu0 %v247
    %v422 = vpop.f32.mrf.mxu0
    %v423 = vadd.f32 0.0, %v422
    %v424 = vpop.f32.mrf.mxu0
    %v425 = vadd.f32 0.0, %v424
    %426 = vmatmul.bf16.gmra.mxu0 %v249
    %v427 = vpop.f32.mrf.mxu0
    %v428 = vadd.f32 0.0, %v427
    %v429 = vpop.f32.mrf.mxu0
    %v430 = vadd.f32 0.0, %v429
    %431 = vmatmul.bf16.gmra.mxu0 %v251
    %v432 = vpop.f32.mrf.mxu0
    %v433 = vadd.f32 0.0, %v432
    %v434 = vpop.f32.mrf.mxu0
    %v435 = vadd.f32 0.0, %v434
    %436 = vmatmul.bf16.gmra.mxu0 %v253
    %v437 = vpop.f32.mrf.mxu0
    %v438 = vadd.f32 0.0, %v437
    %v439 = vpop.f32.mrf.mxu0
    %v440 = vadd.f32 0.0, %v439
    %441 = vmatmul.bf16.gmra.mxu0 %v255
    %v442 = vpop.f32.mrf.mxu0
    %v443 = vadd.f32 0.0, %v442
    %v444 = vpop.f32.mrf.mxu0
    %v445 = vadd.f32 0.0, %v444
    %446 = vmatmul.bf16.gmra.mxu0 %v257
    %v447 = vpop.f32.mrf.mxu0
    %v448 = vadd.f32 0.0, %v447
    %v449 = vpop.f32.mrf.mxu0
    %v450 = vadd.f32 0.0, %v449
    %451 = vmatmul.bf16.gmra.mxu0 %v259
    %v452 = vpop.f32.mrf.mxu0
    %v453 = vadd.f32 0.0, %v452
    %v454 = vpop.f32.mrf.mxu0
    %v455 = vadd.f32 0.0, %v454
    %456 = vmatmul.bf16.gmra.mxu0 %v261
    %v457 = vpop.f32.mrf.mxu0
    %v458 = vadd.f32 0.0, %v457
    %v459 = vpop.f32.mrf.mxu0
    %v460 = vadd.f32 0.0, %v459
    %461 = vmatmul.bf16.gmra.mxu0 %v263
    %v462 = vpop.f32.mrf.mxu0
    %v463 = vadd.f32 0.0, %v462
    %v464 = vpop.f32.mrf.mxu0
    %v465 = vadd.f32 0.0, %v464
    %466 = vmatmul.bf16.gmra.mxu0 %v265
    %v467 = vpop.f32.mrf.mxu0
    %v468 = vadd.f32 0.0, %v467
    %v469 = vpop.f32.mrf.mxu0
    %v470 = vadd.f32 0.0, %v469
    %471 = vmatmul.bf16.gmra.mxu0 %v267
    %v472 = vpop.f32.mrf.mxu0
    %v473 = vadd.f32 0.0, %v472
    %v474 = vpop.f32.mrf.mxu0
    %v475 = vadd.f32 0.0, %v474
    %476 = vmatmul.bf16.gmra.mxu0 %v269
    %v477 = vpop.f32.mrf.mxu0
    %v478 = vadd.f32 0.0, %v477
    %v479 = vpop.f32.mrf.mxu0
    %v480 = vadd.f32 0.0, %v479
    %481 = vmatmul.bf16.gmra.mxu0 %v271
    %v482 = vpop.f32.mrf.mxu0
    %v483 = vadd.f32 0.0, %v482
    %v484 = vpop.f32.mrf.mxu0
    %v485 = vadd.f32 0.0, %v484
    %486 = vmatmul.bf16.gmra.mxu0 %v273
    %v487 = vpop.f32.mrf.mxu0
    %v488 = vadd.f32 0.0, %v487
    %v489 = vpop.f32.mrf.mxu0
    %v490 = vadd.f32 0.0, %v489
    %491 = vdwg.mxu0
    %492 = vmatpush.bf16.msra.mxu0 %v386
    %493 = vmatpush.bf16.msra.mxu0 %v385
    %494 = vmatpush.bf16.msra.mxu0 %v384
    %495 = vmatpush.bf16.msra.mxu0 %v383
    %496 = vmatpush.bf16.msra.mxu0 %v382
    %497 = vmatpush.bf16.msra.mxu0 %v381
    %498 = vmatpush.bf16.msra.mxu0 %v380
    %499 = vmatpush.bf16.msra.mxu0 %v379
    %500 = vmatmul.bf16.gmra.mxu0 %v244
    %v501 = vpop.f32.mrf.mxu0
    %v502 = vadd.f32 %v413, %v501
    %v503 = vpop.f32.mrf.mxu0
    %v504 = vadd.f32 %v415, %v503
    %505 = vmatmul.bf16.gmra.mxu0 %v246
    %v506 = vpop.f32.mrf.mxu0
    %v507 = vadd.f32 %v418, %v506
    %v508 = vpop.f32.mrf.mxu0
    %v509 = vadd.f32 %v420, %v508
    %510 = vmatmul.bf16.gmra.mxu0 %v248
    %v511 = vpop.f32.mrf.mxu0
    %v512 = vadd.f32 %v423, %v511
    %v513 = vpop.f32.mrf.mxu0
    %v514 = vadd.f32 %v425, %v513
    %515 = vmatmul.bf16.gmra.mxu0 %v250
    %v516 = vpop.f32.mrf.mxu0
    %v517 = vadd.f32 %v428, %v516
    %v518 = vpop.f32.mrf.mxu0
    %v519 = vadd.f32 %v430, %v518
    %520 = vmatmul.bf16.gmra.mxu0 %v252
    %v521 = vpop.f32.mrf.mxu0
    %v522 = vadd.f32 %v433, %v521
    %v523 = vpop.f32.mrf.mxu0
    %v524 = vadd.f32 %v435, %v523
    %525 = vmatmul.bf16.gmra.mxu0 %v254
    %v526 = vpop.f32.mrf.mxu0
    %v527 = vadd.f32 %v438, %v526
    %v528 = vpop.f32.mrf.mxu0
    %v529 = vadd.f32 %v440, %v528
    %530 = vmatmul.bf16.gmra.mxu0 %v256
    %v531 = vpop.f32.mrf.mxu0
    %v532 = vadd.f32 %v443, %v531
    %v533 = vpop.f32.mrf.mxu0
    %v534 = vadd.f32 %v445, %v533
    %535 = vmatmul.bf16.gmra.mxu0 %v258
    %v536 = vpop.f32.mrf.mxu0
    %v537 = vadd.f32 %v448, %v536
    %v538 = vpop.f32.mrf.mxu0
    %v539 = vadd.f32 %v450, %v538
    %540 = vmatmul.bf16.gmra.mxu0 %v260
    %v541 = vpop.f32.mrf.mxu0
    %v542 = vadd.f32 %v453, %v541
    %v543 = vpop.f32.mrf.mxu0
    %v544 = vadd.f32 %v455, %v543
    %545 = vmatmul.bf16.gmra.mxu0 %v262
    %v546 = vpop.f32.mrf.mxu0
    %v547 = vadd.f32 %v458, %v546
    %v548 = vpop.f32.mrf.mxu0
    %v549 = vadd.f32 %v460, %v548
    %550 = vmatmul.bf16.gmra.mxu0 %v264
    %v551 = vpop.f32.mrf.mxu0
    %v552 = vadd.f32 %v463, %v551
    %v553 = vpop.f32.mrf.mxu0
    %v554 = vadd.f32 %v465, %v553
    %555 = vmatmul.bf16.gmra.mxu0 %v266
    %v556 = vpop.f32.mrf.mxu0
    %v557 = vadd.f32 %v468, %v556
    %v558 = vpop.f32.mrf.mxu0
    %v559 = vadd.f32 %v470, %v558
    %560 = vmatmul.bf16.gmra.mxu0 %v268
    %v561 = vpop.f32.mrf.mxu0
    %v562 = vadd.f32 %v473, %v561
    %v563 = vpop.f32.mrf.mxu0
    %v564 = vadd.f32 %v475, %v563
    %565 = vmatmul.bf16.gmra.mxu0 %v270
    %v566 = vpop.f32.mrf.mxu0
    %v567 = vadd.f32 %v478, %v566
    %v568 = vpop.f32.mrf.mxu0
    %v569 = vadd.f32 %v480, %v568
    %570 = vmatmul.bf16.gmra.mxu0 %v272
    %v571 = vpop.f32.mrf.mxu0
    %v572 = vadd.f32 %v483, %v571
    %v573 = vpop.f32.mrf.mxu0
    %v574 = vadd.f32 %v485, %v573
    %575 = vmatmul.bf16.gmra.mxu0 %v274
    %v576 = vpop.f32.mrf.mxu0
    %v577 = vadd.f32 %v488, %v576
    %v578 = vpop.f32.mrf.mxu0
    %v579 = vadd.f32 %v490, %v578
    %580 = vdwg.mxu0
    %v581 = vadd.f32 %v51, %v502
    %v582 = vadd.f32 %v52, %v504
    %v583 = vadd.f32 %v53, %v507
    %v584 = vadd.f32 %v54, %v509
    %v585 = vadd.f32 %v55, %v512
    %v586 = vadd.f32 %v56, %v514
    %v587 = vadd.f32 %v57, %v517
    %v588 = vadd.f32 %v58, %v519
    %v589 = vadd.f32 %v59, %v522
    %v590 = vadd.f32 %v60, %v524
    %v591 = vadd.f32 %v61, %v527
    %v592 = vadd.f32 %v62, %v529
    %v593 = vadd.f32 %v63, %v532
    %v594 = vadd.f32 %v64, %v534
    %v595 = vadd.f32 %v65, %v537
    %v596 = vadd.f32 %v66, %v539
    %v597 = vadd.f32 %v67, %v542
    %v598 = vadd.f32 %v68, %v544
    %v599 = vadd.f32 %v69, %v547
    %v600 = vadd.f32 %v70, %v549
    %v601 = vadd.f32 %v71, %v552
    %v602 = vadd.f32 %v72, %v554
    %v603 = vadd.f32 %v73, %v557
    %v604 = vadd.f32 %v74, %v559
    %v605 = vadd.f32 %v75, %v562
    %v606 = vadd.f32 %v76, %v564
    %v607 = vadd.f32 %v77, %v567
    %v608 = vadd.f32 %v78, %v569
    %v609 = vadd.f32 %v79, %v572
    %v610 = vadd.f32 %v80, %v574
    %v611 = vadd.f32 %v81, %v577
    %v612 = vadd.f32 %v82, %v579
    %613 = vst [vmem:[#allocation2] sm:$0xff] %v581
    %614 = vst [vmem:[#allocation2 + $0x8] sm:$0xff] %v582
    %615 = vst [vmem:[#allocation2 + $0x10] sm:$0xff] %v583
    %616 = vst [vmem:[#allocation2 + $0x18] sm:$0xff] %v584
    %617 = vst [vmem:[#allocation2 + $0x20] sm:$0xff] %v585
    %618 = vst [vmem:[#allocation2 + $0x28] sm:$0xff] %v586
    %619 = vst [vmem:[#allocation2 + $0x30] sm:$0xff] %v587
    %620 = vst [vmem:[#allocation2 + $0x38] sm:$0xff] %v588
    %621 = vst [vmem:[#allocation2 + $0x40] sm:$0xff] %v589
    %622 = vst [vmem:[#allocation2 + $0x48] sm:$0xff] %v590
    %623 = vst [vmem:[#allocation2 + $0x50] sm:$0xff] %v591
    %624 = vst [vmem:[#allocation2 + $0x58] sm:$0xff] %v592
    %625 = vst [vmem:[#allocation2 + $0x60] sm:$0xff] %v593
    %626 = vst [vmem:[#allocation2 + $0x68] sm:$0xff] %v594
    %627 = vst [vmem:[#allocation2 + $0x70] sm:$0xff] %v595
    %628 = vst [vmem:[#allocation2 + $0x78] sm:$0xff] %v596
    %629 = vst [vmem:[#allocation2 + $0x80] sm:$0xff] %v597
    %630 = vst [vmem:[#allocation2 + $0x88] sm:$0xff] %v598
    %631 = vst [vmem:[#allocation2 + $0x90] sm:$0xff] %v599
    %632 = vst [vmem:[#allocation2 + $0x98] sm:$0xff] %v600
    %633 = vst [vmem:[#allocation2 + $0xa0] sm:$0xff] %v601
    %634 = vst [vmem:[#allocation2 + $0xa8] sm:$0xff] %v602
    %635 = vst [vmem:[#allocation2 + $0xb0] sm:$0xff] %v603
    %636 = vst [vmem:[#allocation2 + $0xb8] sm:$0xff] %v604
    %637 = vst [vmem:[#allocation2 + $0xc0] sm:$0xff] %v605
    %638 = vst [vmem:[#allocation2 + $0xc8] sm:$0xff] %v606
    %639 = vst [vmem:[#allocation2 + $0xd0] sm:$0xff] %v607
    %640 = vst [vmem:[#allocation2 + $0xd8] sm:$0xff] %v608
    %641 = vst [vmem:[#allocation2 + $0xe0] sm:$0xff] %v609
    %642 = vst [vmem:[#allocation2 + $0xe8] sm:$0xff] %v610
    %643 = vst [vmem:[#allocation2 + $0xf0] sm:$0xff] %v611
    %644 = vst [vmem:[#allocation2 + $0xf8] sm:$0xff] %v612
    // Predicated region
    $region18: #{graph_convolution.3} parent=1 // pred_check
      %p645 = pneg %p15
    $region19: #{graph_convolution.3} parent=1 // pred_check_branch
      %647 = sbr.rel (%p645) target = $region21
    $region20: #{graph_convolution.3} parent=1 // pred_region
      %v648 = vld [vmem:[#allocation2] sm:$0xff]
      %v649 = vld [vmem:[#allocation2 + $0x8] sm:$0xff]
      %v650 = vld [vmem:[#allocation2 + $0x10] sm:$0xff]
      %v651 = vld [vmem:[#allocation2 + $0x18] sm:$0xff]
      %v652 = vld [vmem:[#allocation2 + $0x20] sm:$0xff]
      %v653 = vld [vmem:[#allocation2 + $0x28] sm:$0xff]
      %v654 = vld [vmem:[#allocation2 + $0x30] sm:$0xff]
      %v655 = vld [vmem:[#allocation2 + $0x38] sm:$0xff]
      %v656 = vld [vmem:[#allocation2 + $0x40] sm:$0xff]
      %v657 = vld [vmem:[#allocation2 + $0x48] sm:$0xff]
      %v658 = vld [vmem:[#allocation2 + $0x50] sm:$0xff]
      %v659 = vld [vmem:[#allocation2 + $0x58] sm:$0xff]
      %v660 = vld [vmem:[#allocation2 + $0x60] sm:$0xff]
      %v661 = vld [vmem:[#allocation2 + $0x68] sm:$0xff]
      %v662 = vld [vmem:[#allocation2 + $0x70] sm:$0xff]
      %v663 = vld [vmem:[#allocation2 + $0x78] sm:$0xff]
      %v664 = vld [vmem:[#allocation2 + $0x80] sm:$0xff]
      %v665 = vld [vmem:[#allocation2 + $0x88] sm:$0xff]
      %v666 = vld [vmem:[#allocation2 + $0x90] sm:$0xff]
      %v667 = vld [vmem:[#allocation2 + $0x98] sm:$0xff]
      %v668 = vld [vmem:[#allocation2 + $0xa0] sm:$0xff]
      %v669 = vld [vmem:[#allocation2 + $0xa8] sm:$0xff]
      %v670 = vld [vmem:[#allocation2 + $0xb0] sm:$0xff]
      %v671 = vld [vmem:[#allocation2 + $0xb8] sm:$0xff]
      %v672 = vld [vmem:[#allocation2 + $0xc0] sm:$0xff]
      %v673 = vld [vmem:[#allocation2 + $0xc8] sm:$0xff]
      %v674 = vld [vmem:[#allocation2 + $0xd0] sm:$0xff]
      %v675 = vld [vmem:[#allocation2 + $0xd8] sm:$0xff]
      %v676 = vld [vmem:[#allocation2 + $0xe0] sm:$0xff]
      %v677 = vld [vmem:[#allocation2 + $0xe8] sm:$0xff]
      %v678 = vld [vmem:[#allocation2 + $0xf0] sm:$0xff]
      %v679 = vld [vmem:[#allocation2 + $0xf8] sm:$0xff]
      %v680 = vld [vmem:[%s2] sm:$0x1]
      %v682 = vperm.slane %v680, 0
      %v684 = vadd.f32 %v648, %v682
      %v685 = vadd.f32 %v649, %v682
      %v686 = vadd.f32 %v650, %v682
      %v687 = vadd.f32 %v651, %v682
      %v688 = vadd.f32 %v652, %v682
      %v689 = vadd.f32 %v653, %v682
      %v690 = vadd.f32 %v654, %v682
      %v691 = vadd.f32 %v655, %v682
      %v692 = vadd.f32 %v656, %v682
      %v693 = vadd.f32 %v657, %v682
      %v694 = vadd.f32 %v658, %v682
      %v695 = vadd.f32 %v659, %v682
      %v696 = vadd.f32 %v660, %v682
      %v697 = vadd.f32 %v661, %v682
      %v698 = vadd.f32 %v662, %v682
      %v699 = vadd.f32 %v663, %v682
      %v700 = vadd.f32 %v664, %v682
      %v701 = vadd.f32 %v665, %v682
      %v702 = vadd.f32 %v666, %v682
      %v703 = vadd.f32 %v667, %v682
      %v704 = vadd.f32 %v668, %v682
      %v705 = vadd.f32 %v669, %v682
      %v706 = vadd.f32 %v670, %v682
      %v707 = vadd.f32 %v671, %v682
      %v708 = vadd.f32 %v672, %v682
      %v709 = vadd.f32 %v673, %v682
      %v710 = vadd.f32 %v674, %v682
      %v711 = vadd.f32 %v675, %v682
      %v712 = vadd.f32 %v676, %v682
      %v713 = vadd.f32 %v677, %v682
      %v714 = vadd.f32 %v678, %v682
      %v715 = vadd.f32 %v679, %v682
      %716 = vst [vmem:[#allocation3] sm:$0xff] %v684
      %717 = vst [vmem:[#allocation3 + $0x8] sm:$0xff] %v685
      %718 = vst [vmem:[#allocation3 + $0x10] sm:$0xff] %v686
      %719 = vst [vmem:[#allocation3 + $0x18] sm:$0xff] %v687
      %720 = vst [vmem:[#allocation3 + $0x20] sm:$0xff] %v688
      %721 = vst [vmem:[#allocation3 + $0x28] sm:$0xff] %v689
      %722 = vst [vmem:[#allocation3 + $0x30] sm:$0xff] %v690
      %723 = vst [vmem:[#allocation3 + $0x38] sm:$0xff] %v691
      %724 = vst [vmem:[#allocation3 + $0x40] sm:$0xff] %v692
      %725 = vst [vmem:[#allocation3 + $0x48] sm:$0xff] %v693
      %726 = vst [vmem:[#allocation3 + $0x50] sm:$0xff] %v694
      %727 = vst [vmem:[#allocation3 + $0x58] sm:$0xff] %v695
      %728 = vst [vmem:[#allocation3 + $0x60] sm:$0xff] %v696
      %729 = vst [vmem:[#allocation3 + $0x68] sm:$0xff] %v697
      %730 = vst [vmem:[#allocation3 + $0x70] sm:$0xff] %v698
      %731 = vst [vmem:[#allocation3 + $0x78] sm:$0xff] %v699
      %732 = vst [vmem:[#allocation3 + $0x80] sm:$0xff] %v700
      %733 = vst [vmem:[#allocation3 + $0x88] sm:$0xff] %v701
      %734 = vst [vmem:[#allocation3 + $0x90] sm:$0xff] %v702
      %735 = vst [vmem:[#allocation3 + $0x98] sm:$0xff] %v703
      %736 = vst [vmem:[#allocation3 + $0xa0] sm:$0xff] %v704
      %737 = vst [vmem:[#allocation3 + $0xa8] sm:$0xff] %v705
      %738 = vst [vmem:[#allocation3 + $0xb0] sm:$0xff] %v706
      %739 = vst [vmem:[#allocation3 + $0xb8] sm:$0xff] %v707
      %740 = vst [vmem:[#allocation3 + $0xc0] sm:$0xff] %v708
      %741 = vst [vmem:[#allocation3 + $0xc8] sm:$0xff] %v709
      %742 = vst [vmem:[#allocation3 + $0xd0] sm:$0xff] %v710
      %743 = vst [vmem:[#allocation3 + $0xd8] sm:$0xff] %v711
      %744 = vst [vmem:[#allocation3 + $0xe0] sm:$0xff] %v712
      %745 = vst [vmem:[#allocation3 + $0xe8] sm:$0xff] %v713
      %746 = vst [vmem:[#allocation3 + $0xf0] sm:$0xff] %v714
      %747 = vst [vmem:[#allocation3 + $0xf8] sm:$0xff] %v715
    $region21: #{graph_convolution.3} parent=1 // pred_fallthru
      _
    // Predicated region
    $region22: #{graph_convolution.3} parent=1 // pred_check
      _
    $region23: #{graph_convolution.3} parent=1 // pred_check_branch
      %749 = sbr.rel (0) target = $region25
    $region24: #{graph_convolution.3} parent=1 // pred_region
      %751 = vsyncadd [#allocation4], 0
      %s752 = sshll.u32 [#allocation3], 4
      %s753 = int_to_ptr.vmem [resolvable:$true] %s752
      %s754 = sshll.u32 %s3, 4
      %s755 = int_to_ptr.hbm [resolvable:$true] %s754
      %760 = dma.vmem_to_hbm [thread:$0]  %s753, 4096, %s755, [#allocation4], 128, 128, 8
    $region25: #{graph_convolution.3} parent=1 // pred_fallthru
      _
    // Predicated region
    $region26: #{graph_convolution.3} parent=1 // pred_check
      _
    $region27: #{graph_convolution.3} parent=1 // pred_check_branch
      %762 = sbr.rel (0) target = $region29
    $region28: #{graph_convolution.3} parent=1 // pred_region
      %764 = dma.done [#allocation4], 4096
    $region29: #{graph_convolution.3} parent=1 // pred_fallthru
      _
    %765 = vsyncpa [#allocation4], 1

// kernel: graph_convolution.2
$region0: #{graph_convolution.2}
  #allocation0 [shape = 'u32[]', space=smem, size = 0x4, offset = 0x4, fixed_abs, tag = 'smem constant byte address 0x4 - core index']
  #allocation1 [shape = 'u32[72,128]{1,0:T(1,128)}', space=vmem, size = 0x9000, scoped, tag = 'internal scratch']
  #allocation2 [shape = 'f32[256,128]{1,0:T(8,128)}', space=vmem, size = 0x20000, scoped, tag = 'scratch operand']
  %s0 = inlined_call_operand.vmem [shape: bf16[256,128], index: 0, kind: input, shape index: {}]
  %s1 = inlined_call_operand.vmem [shape: bf16[128,128], index: 1, kind: input, shape index: {}]
  %s2 = inlined_call_operand.vmem [shape: bf16[256,128], index: 2, kind: output, shape index: {}]
  %s3 = sld [smem:[#allocation0]]
  $region26: #{graph_convolution.2} parent=0
    _
  %s5 = ssub.s32 1, %s3
  %s6 = scalar_select 0, %s5, %s3
  // Predicated region
  $region2: #{graph_convolution.2} parent=0 // pred_check
    _
  $region3: #{graph_convolution.2} parent=0 // pred_check_branch
    %8 = sbr.rel (0) target = $region5
  $region4: #{graph_convolution.2} parent=0 // pred_region
    _
  $region5: #{graph_convolution.2} parent=0 // pred_fallthru
    _
  // Predicated region
  $region6: #{graph_convolution.2} parent=0 // pred_check
    _
  $region7: #{graph_convolution.2} parent=0 // pred_check_branch
    %10 = sbr.rel (0) target = $region9
  $region8: #{graph_convolution.2} parent=0 // pred_region
    _
  $region9: #{graph_convolution.2} parent=0 // pred_fallthru
    _
  %p11 = scmp.eq.s32.totalorder 0, 0
  // Predicated region
  $region10: #{graph_convolution.2} parent=0 // pred_check
    %p12 = pneg %p11
  $region11: #{graph_convolution.2} parent=0 // pred_check_branch
    %14 = sbr.rel (%p12) target = $region13
  $region12: #{graph_convolution.2} parent=0 // pred_region
    %15 = vst [vmem:[#allocation2] sm:$0xff] 0.0
    %16 = vst [vmem:[#allocation2 + $0x8] sm:$0xff] 0.0
    %17 = vst [vmem:[#allocation2 + $0x10] sm:$0xff] 0.0
    %18 = vst [vmem:[#allocation2 + $0x18] sm:$0xff] 0.0
    %19 = vst [vmem:[#allocation2 + $0x20] sm:$0xff] 0.0
    %20 = vst [vmem:[#allocation2 + $0x28] sm:$0xff] 0.0
    %21 = vst [vmem:[#allocation2 + $0x30] sm:$0xff] 0.0
    %22 = vst [vmem:[#allocation2 + $0x38] sm:$0xff] 0.0
    %23 = vst [vmem:[#allocation2 + $0x40] sm:$0xff] 0.0
    %24 = vst [vmem:[#allocation2 + $0x48] sm:$0xff] 0.0
    %25 = vst [vmem:[#allocation2 + $0x50] sm:$0xff] 0.0
    %26 = vst [vmem:[#allocation2 + $0x58] sm:$0xff] 0.0
    %27 = vst [vmem:[#allocation2 + $0x60] sm:$0xff] 0.0
    %28 = vst [vmem:[#allocation2 + $0x68] sm:$0xff] 0.0
    %29 = vst [vmem:[#allocation2 + $0x70] sm:$0xff] 0.0
    %30 = vst [vmem:[#allocation2 + $0x78] sm:$0xff] 0.0
    %31 = vst [vmem:[#allocation2 + $0x80] sm:$0xff] 0.0
    %32 = vst [vmem:[#allocation2 + $0x88] sm:$0xff] 0.0
    %33 = vst [vmem:[#allocation2 + $0x90] sm:$0xff] 0.0
    %34 = vst [vmem:[#allocation2 + $0x98] sm:$0xff] 0.0
    %35 = vst [vmem:[#allocation2 + $0xa0] sm:$0xff] 0.0
    %36 = vst [vmem:[#allocation2 + $0xa8] sm:$0xff] 0.0
    %37 = vst [vmem:[#allocation2 + $0xb0] sm:$0xff] 0.0
    %38 = vst [vmem:[#allocation2 + $0xb8] sm:$0xff] 0.0
    %39 = vst [vmem:[#allocation2 + $0xc0] sm:$0xff] 0.0
    %40 = vst [vmem:[#allocation2 + $0xc8] sm:$0xff] 0.0
    %41 = vst [vmem:[#allocation2 + $0xd0] sm:$0xff] 0.0
    %42 = vst [vmem:[#allocation2 + $0xd8] sm:$0xff] 0.0
    %43 = vst [vmem:[#allocation2 + $0xe0] sm:$0xff] 0.0
    %44 = vst [vmem:[#allocation2 + $0xe8] sm:$0xff] 0.0
    %45 = vst [vmem:[#allocation2 + $0xf0] sm:$0xff] 0.0
    %46 = vst [vmem:[#allocation2 + $0xf8] sm:$0xff] 0.0
  $region13: #{graph_convolution.2} parent=0 // pred_fallthru
    _
  %v47 = vld [vmem:[#allocation2] sm:$0xff]
  %v48 = vld [vmem:[#allocation2 + $0x8] sm:$0xff]
  %v49 = vld [vmem:[#allocation2 + $0x10] sm:$0xff]
  %v50 = vld [vmem:[#allocation2 + $0x18] sm:$0xff]
  %v51 = vld [vmem:[#allocation2 + $0x20] sm:$0xff]
  %v52 = vld [vmem:[#allocation2 + $0x28] sm:$0xff]
  %v53 = vld [vmem:[#allocation2 + $0x30] sm:$0xff]
  %v54 = vld [vmem:[#allocation2 + $0x38] sm:$0xff]
  %v55 = vld [vmem:[#allocation2 + $0x40] sm:$0xff]
  %v56 = vld [vmem:[#allocation2 + $0x48] sm:$0xff]
  %v57 = vld [vmem:[#allocation2 + $0x50] sm:$0xff]
  %v58 = vld [vmem:[#allocation2 + $0x58] sm:$0xff]
  %v59 = vld [vmem:[#allocation2 + $0x60] sm:$0xff]
  %v60 = vld [vmem:[#allocation2 + $0x68] sm:$0xff]
  %v61 = vld [vmem:[#allocation2 + $0x70] sm:$0xff]
  %v62 = vld [vmem:[#allocation2 + $0x78] sm:$0xff]
  %v63 = vld [vmem:[#allocation2 + $0x80] sm:$0xff]
  %v64 = vld [vmem:[#allocation2 + $0x88] sm:$0xff]
  %v65 = vld [vmem:[#allocation2 + $0x90] sm:$0xff]
  %v66 = vld [vmem:[#allocation2 + $0x98] sm:$0xff]
  %v67 = vld [vmem:[#allocation2 + $0xa0] sm:$0xff]
  %v68 = vld [vmem:[#allocation2 + $0xa8] sm:$0xff]
  %v69 = vld [vmem:[#allocation2 + $0xb0] sm:$0xff]
  %v70 = vld [vmem:[#allocation2 + $0xb8] sm:$0xff]
  %v71 = vld [vmem:[#allocation2 + $0xc0] sm:$0xff]
  %v72 = vld [vmem:[#allocation2 + $0xc8] sm:$0xff]
  %v73 = vld [vmem:[#allocation2 + $0xd0] sm:$0xff]
  %v74 = vld [vmem:[#allocation2 + $0xd8] sm:$0xff]
  %v75 = vld [vmem:[#allocation2 + $0xe0] sm:$0xff]
  %v76 = vld [vmem:[#allocation2 + $0xe8] sm:$0xff]
  %v77 = vld [vmem:[#allocation2 + $0xf0] sm:$0xff]
  %v78 = vld [vmem:[#allocation2 + $0xf8] sm:$0xff]
  %v79 = vld [vmem:[%s0] sm:$0xf]
  %v80 = vld [vmem:[%s0 + $0x4] sm:$0xf]
  %v81 = vld [vmem:[%s0 + $0x8] sm:$0xf]
  %v82 = vld [vmem:[%s0 + $0xc] sm:$0xf]
  %v83 = vld [vmem:[%s0 + $0x10] sm:$0xf]
  %v84 = vld [vmem:[%s0 + $0x14] sm:$0xf]
  %v85 = vld [vmem:[%s0 + $0x18] sm:$0xf]
  %v86 = vld [vmem:[%s0 + $0x1c] sm:$0xf]
  %v87 = vld [vmem:[%s0 + $0x20] sm:$0xf]
  %v88 = vld [vmem:[%s0 + $0x24] sm:$0xf]
  %v89 = vld [vmem:[%s0 + $0x28] sm:$0xf]
  %v90 = vld [vmem:[%s0 + $0x2c] sm:$0xf]
  %v91 = vld [vmem:[%s0 + $0x30] sm:$0xf]
  %v92 = vld [vmem:[%s0 + $0x34] sm:$0xf]
  %v93 = vld [vmem:[%s0 + $0x38] sm:$0xf]
  %v94 = vld [vmem:[%s0 + $0x3c] sm:$0xf]
  %v95 = vld [vmem:[%s0 + $0x40] sm:$0xf]
  %v96 = vld [vmem:[%s0 + $0x44] sm:$0xf]
  %v97 = vld [vmem:[%s0 + $0x48] sm:$0xf]
  %v98 = vld [vmem:[%s0 + $0x4c] sm:$0xf]
  %v99 = vld [vmem:[%s0 + $0x50] sm:$0xf]
  %v100 = vld [vmem:[%s0 + $0x54] sm:$0xf]
  %v101 = vld [vmem:[%s0 + $0x58] sm:$0xf]
  %v102 = vld [vmem:[%s0 + $0x5c] sm:$0xf]
  %v103 = vld [vmem:[%s0 + $0x60] sm:$0xf]
  %v104 = vld [vmem:[%s0 + $0x64] sm:$0xf]
  %v105 = vld [vmem:[%s0 + $0x68] sm:$0xf]
  %v106 = vld [vmem:[%s0 + $0x6c] sm:$0xf]
  %v107 = vld [vmem:[%s0 + $0x70] sm:$0xf]
  %v108 = vld [vmem:[%s0 + $0x74] sm:$0xf]
  %v109 = vld [vmem:[%s0 + $0x78] sm:$0xf]
  %v110 = vld [vmem:[%s0 + $0x7c] sm:$0xf]
  %v111 = vld [vmem:[%s1] sm:$0xf]
  %v112 = vld [vmem:[%s1 + $0x4] sm:$0xf]
  %v113 = vld [vmem:[%s1 + $0x8] sm:$0xf]
  %v114 = vld [vmem:[%s1 + $0xc] sm:$0xf]
  %v115 = vld [vmem:[%s1 + $0x10] sm:$0xf]
  %v116 = vld [vmem:[%s1 + $0x14] sm:$0xf]
  %v117 = vld [vmem:[%s1 + $0x18] sm:$0xf]
  %v118 = vld [vmem:[%s1 + $0x1c] sm:$0xf]
  %v119 = vld [vmem:[%s1 + $0x20] sm:$0xf]
  %v120 = vld [vmem:[%s1 + $0x24] sm:$0xf]
  %v121 = vld [vmem:[%s1 + $0x28] sm:$0xf]
  %v122 = vld [vmem:[%s1 + $0x2c] sm:$0xf]
  %v123 = vld [vmem:[%s1 + $0x30] sm:$0xf]
  %v124 = vld [vmem:[%s1 + $0x34] sm:$0xf]
  %v125 = vld [vmem:[%s1 + $0x38] sm:$0xf]
  %v126 = vld [vmem:[%s1 + $0x3c] sm:$0xf]
  %v159 = vunpack.c.l.b16 %v79
  %v160 = vunpack.c.l.b16 %v80
  %v161 = vunpack.c.l.b16 %v81
  %v162 = vunpack.c.l.b16 %v82
  %v163 = vunpack.c.l.b16 %v83
  %v164 = vunpack.c.l.b16 %v84
  %v165 = vunpack.c.l.b16 %v85
  %v166 = vunpack.c.l.b16 %v86
  %v167 = vunpack.c.l.b16 %v87
  %v168 = vunpack.c.l.b16 %v88
  %v169 = vunpack.c.l.b16 %v89
  %v170 = vunpack.c.l.b16 %v90
  %v171 = vunpack.c.l.b16 %v91
  %v172 = vunpack.c.l.b16 %v92
  %v173 = vunpack.c.l.b16 %v93
  %v174 = vunpack.c.l.b16 %v94
  %v175 = vunpack.c.l.b16 %v95
  %v176 = vunpack.c.l.b16 %v96
  %v177 = vunpack.c.l.b16 %v97
  %v178 = vunpack.c.l.b16 %v98
  %v179 = vunpack.c.l.b16 %v99
  %v180 = vunpack.c.l.b16 %v100
  %v181 = vunpack.c.l.b16 %v101
  %v182 = vunpack.c.l.b16 %v102
  %v183 = vunpack.c.l.b16 %v103
  %v184 = vunpack.c.l.b16 %v104
  %v185 = vunpack.c.l.b16 %v105
  %v186 = vunpack.c.l.b16 %v106
  %v187 = vunpack.c.l.b16 %v107
  %v188 = vunpack.c.l.b16 %v108
  %v189 = vunpack.c.l.b16 %v109
  %v190 = vunpack.c.l.b16 %v110
  %v191 = vpack.c.b16 %v160, %v159
  %v192 = vpack.c.b16 %v162, %v161
  %v193 = vpack.c.b16 %v164, %v163
  %v194 = vpack.c.b16 %v166, %v165
  %v195 = vpack.c.b16 %v168, %v167
  %v196 = vpack.c.b16 %v170, %v169
  %v197 = vpack.c.b16 %v172, %v171
  %v198 = vpack.c.b16 %v174, %v173
  %v199 = vpack.c.b16 %v176, %v175
  %v200 = vpack.c.b16 %v178, %v177
  %v201 = vpack.c.b16 %v180, %v179
  %v202 = vpack.c.b16 %v182, %v181
  %v203 = vpack.c.b16 %v184, %v183
  %v204 = vpack.c.b16 %v186, %v185
  %v205 = vpack.c.b16 %v188, %v187
  %v206 = vpack.c.b16 %v190, %v189
  %v239 = vunpack.c.l.b16 %v111
  %v240 = vunpack.c.l.b16 %v112
  %v241 = vunpack.c.l.b16 %v113
  %v242 = vunpack.c.l.b16 %v114
  %v243 = vunpack.c.l.b16 %v115
  %v244 = vunpack.c.l.b16 %v116
  %v245 = vunpack.c.l.b16 %v117
  %v246 = vunpack.c.l.b16 %v118
  %v247 = vunpack.c.l.b16 %v119
  %v248 = vunpack.c.l.b16 %v120
  %v249 = vunpack.c.l.b16 %v121
  %v250 = vunpack.c.l.b16 %v122
  %v251 = vunpack.c.l.b16 %v123
  %v252 = vunpack.c.l.b16 %v124
  %v253 = vunpack.c.l.b16 %v125
  %v254 = vunpack.c.l.b16 %v126
  %v255 = vpack.c.b16 %v240, %v239
  %v256 = vpack.c.b16 %v242, %v241
  %v257 = vpack.c.b16 %v244, %v243
  %v258 = vpack.c.b16 %v246, %v245
  %v259 = vpack.c.b16 %v248, %v247
  %v260 = vpack.c.b16 %v250, %v249
  %v261 = vpack.c.b16 %v252, %v251
  %v262 = vpack.c.b16 %v254, %v253
  %271 = vmatpush.bf16.msra.mxu0 %v262
  %272 = vmatpush.bf16.msra.mxu0 %v261
  %273 = vmatpush.bf16.msra.mxu0 %v260
  %274 = vmatpush.bf16.msra.mxu0 %v259
  %275 = vmatpush.bf16.msra.mxu0 %v258
  %276 = vmatpush.bf16.msra.mxu0 %v257
  %277 = vmatpush.bf16.msra.mxu0 %v256
  %278 = vmatpush.bf16.msra.mxu0 %v255
  %279 = vmatmul.bf16.gmra.mxu0 %v191
  %v280 = vpop.f32.mrf.mxu0
  %v281 = vadd.f32 0.0, %v280
  %v282 = vpop.f32.mrf.mxu0
  %v283 = vadd.f32 0.0, %v282
  %284 = vmatmul.bf16.gmra.mxu0 %v192
  %v285 = vpop.f32.mrf.mxu0
  %v286 = vadd.f32 0.0, %v285
  %v287 = vpop.f32.mrf.mxu0
  %v288 = vadd.f32 0.0, %v287
  %289 = vmatmul.bf16.gmra.mxu0 %v193
  %v290 = vpop.f32.mrf.mxu0
  %v291 = vadd.f32 0.0, %v290
  %v292 = vpop.f32.mrf.mxu0
  %v293 = vadd.f32 0.0, %v292
  %294 = vmatmul.bf16.gmra.mxu0 %v194
  %v295 = vpop.f32.mrf.mxu0
  %v296 = vadd.f32 0.0, %v295
  %v297 = vpop.f32.mrf.mxu0
  %v298 = vadd.f32 0.0, %v297
  %299 = vmatmul.bf16.gmra.mxu0 %v195
  %v300 = vpop.f32.mrf.mxu0
  %v301 = vadd.f32 0.0, %v300
  %v302 = vpop.f32.mrf.mxu0
  %v303 = vadd.f32 0.0, %v302
  %304 = vmatmul.bf16.gmra.mxu0 %v196
  %v305 = vpop.f32.mrf.mxu0
  %v306 = vadd.f32 0.0, %v305
  %v307 = vpop.f32.mrf.mxu0
  %v308 = vadd.f32 0.0, %v307
  %309 = vmatmul.bf16.gmra.mxu0 %v197
  %v310 = vpop.f32.mrf.mxu0
  %v311 = vadd.f32 0.0, %v310
  %v312 = vpop.f32.mrf.mxu0
  %v313 = vadd.f32 0.0, %v312
  %314 = vmatmul.bf16.gmra.mxu0 %v198
  %v315 = vpop.f32.mrf.mxu0
  %v316 = vadd.f32 0.0, %v315
  %v317 = vpop.f32.mrf.mxu0
  %v318 = vadd.f32 0.0, %v317
  %319 = vmatmul.bf16.gmra.mxu0 %v199
  %v320 = vpop.f32.mrf.mxu0
  %v321 = vadd.f32 0.0, %v320
  %v322 = vpop.f32.mrf.mxu0
  %v323 = vadd.f32 0.0, %v322
  %324 = vmatmul.bf16.gmra.mxu0 %v200
  %v325 = vpop.f32.mrf.mxu0
  %v326 = vadd.f32 0.0, %v325
  %v327 = vpop.f32.mrf.mxu0
  %v328 = vadd.f32 0.0, %v327
  %329 = vmatmul.bf16.gmra.mxu0 %v201
  %v330 = vpop.f32.mrf.mxu0
  %v331 = vadd.f32 0.0, %v330
  %v332 = vpop.f32.mrf.mxu0
  %v333 = vadd.f32 0.0, %v332
  %334 = vmatmul.bf16.gmra.mxu0 %v202
  %v335 = vpop.f32.mrf.mxu0
  %v336 = vadd.f32 0.0, %v335
  %v337 = vpop.f32.mrf.mxu0
  %v338 = vadd.f32 0.0, %v337
  %339 = vmatmul.bf16.gmra.mxu0 %v203
  %v340 = vpop.f32.mrf.mxu0
  %v341 = vadd.f32 0.0, %v340
  %v342 = vpop.f32.mrf.mxu0
  %v343 = vadd.f32 0.0, %v342
  %344 = vmatmul.bf16.gmra.mxu0 %v204
  %v345 = vpop.f32.mrf.mxu0
  %v346 = vadd.f32 0.0, %v345
  %v347 = vpop.f32.mrf.mxu0
  %v348 = vadd.f32 0.0, %v347
  %349 = vmatmul.bf16.gmra.mxu0 %v205
  %v350 = vpop.f32.mrf.mxu0
  %v351 = vadd.f32 0.0, %v350
  %v352 = vpop.f32.mrf.mxu0
  %v353 = vadd.f32 0.0, %v352
  %354 = vmatmul.bf16.gmra.mxu0 %v206
  %v355 = vpop.f32.mrf.mxu0
  %v356 = vadd.f32 0.0, %v355
  %v357 = vpop.f32.mrf.mxu0
  %v358 = vadd.f32 0.0, %v357
  %359 = vdwg.mxu0
  %v360 = vadd.f32 %v47, %v281
  %v361 = vadd.f32 %v48, %v283
  %v362 = vadd.f32 %v49, %v286
  %v363 = vadd.f32 %v50, %v288
  %v364 = vadd.f32 %v51, %v291
  %v365 = vadd.f32 %v52, %v293
  %v366 = vadd.f32 %v53, %v296
  %v367 = vadd.f32 %v54, %v298
  %v368 = vadd.f32 %v55, %v301
  %v369 = vadd.f32 %v56, %v303
  %v370 = vadd.f32 %v57, %v306
  %v371 = vadd.f32 %v58, %v308
  %v372 = vadd.f32 %v59, %v311
  %v373 = vadd.f32 %v60, %v313
  %v374 = vadd.f32 %v61, %v316
  %v375 = vadd.f32 %v62, %v318
  %v376 = vadd.f32 %v63, %v321
  %v377 = vadd.f32 %v64, %v323
  %v378 = vadd.f32 %v65, %v326
  %v379 = vadd.f32 %v66, %v328
  %v380 = vadd.f32 %v67, %v331
  %v381 = vadd.f32 %v68, %v333
  %v382 = vadd.f32 %v69, %v336
  %v383 = vadd.f32 %v70, %v338
  %v384 = vadd.f32 %v71, %v341
  %v385 = vadd.f32 %v72, %v343
  %v386 = vadd.f32 %v73, %v346
  %v387 = vadd.f32 %v74, %v348
  %v388 = vadd.f32 %v75, %v351
  %v389 = vadd.f32 %v76, %v353
  %v390 = vadd.f32 %v77, %v356
  %v391 = vadd.f32 %v78, %v358
  %392 = vst [vmem:[#allocation2] sm:$0xff] %v360
  %393 = vst [vmem:[#allocation2 + $0x8] sm:$0xff] %v361
  %394 = vst [vmem:[#allocation2 + $0x10] sm:$0xff] %v362
  %395 = vst [vmem:[#allocation2 + $0x18] sm:$0xff] %v363
  %396 = vst [vmem:[#allocation2 + $0x20] sm:$0xff] %v364
  %397 = vst [vmem:[#allocation2 + $0x28] sm:$0xff] %v365
  %398 = vst [vmem:[#allocation2 + $0x30] sm:$0xff] %v366
  %399 = vst [vmem:[#allocation2 + $0x38] sm:$0xff] %v367
  %400 = vst [vmem:[#allocation2 + $0x40] sm:$0xff] %v368
  %401 = vst [vmem:[#allocation2 + $0x48] sm:$0xff] %v369
  %402 = vst [vmem:[#allocation2 + $0x50] sm:$0xff] %v370
  %403 = vst [vmem:[#allocation2 + $0x58] sm:$0xff] %v371
  %404 = vst [vmem:[#allocation2 + $0x60] sm:$0xff] %v372
  %405 = vst [vmem:[#allocation2 + $0x68] sm:$0xff] %v373
  %406 = vst [vmem:[#allocation2 + $0x70] sm:$0xff] %v374
  %407 = vst [vmem:[#allocation2 + $0x78] sm:$0xff] %v375
  %408 = vst [vmem:[#allocation2 + $0x80] sm:$0xff] %v376
  %409 = vst [vmem:[#allocation2 + $0x88] sm:$0xff] %v377
  %410 = vst [vmem:[#allocation2 + $0x90] sm:$0xff] %v378
  %411 = vst [vmem:[#allocation2 + $0x98] sm:$0xff] %v379
  %412 = vst [vmem:[#allocation2 + $0xa0] sm:$0xff] %v380
  %413 = vst [vmem:[#allocation2 + $0xa8] sm:$0xff] %v381
  %414 = vst [vmem:[#allocation2 + $0xb0] sm:$0xff] %v382
  %415 = vst [vmem:[#allocation2 + $0xb8] sm:$0xff] %v383
  %416 = vst [vmem:[#allocation2 + $0xc0] sm:$0xff] %v384
  %417 = vst [vmem:[#allocation2 + $0xc8] sm:$0xff] %v385
  %418 = vst [vmem:[#allocation2 + $0xd0] sm:$0xff] %v386
  %419 = vst [vmem:[#allocation2 + $0xd8] sm:$0xff] %v387
  %420 = vst [vmem:[#allocation2 + $0xe0] sm:$0xff] %v388
  %421 = vst [vmem:[#allocation2 + $0xe8] sm:$0xff] %v389
  %422 = vst [vmem:[#allocation2 + $0xf0] sm:$0xff] %v390
  %423 = vst [vmem:[#allocation2 + $0xf8] sm:$0xff] %v391
  // Predicated region
  $region14: #{graph_convolution.2} parent=0 // pred_check
    %p424 = pneg %p11
  $region15: #{graph_convolution.2} parent=0 // pred_check_branch
    %426 = sbr.rel (%p424) target = $region17
  $region16: #{graph_convolution.2} parent=0 // pred_region
    %v427 = vld [vmem:[#allocation2] sm:$0xff]
    %v428 = vld [vmem:[#allocation2 + $0x8] sm:$0xff]
    %v429 = vld [vmem:[#allocation2 + $0x10] sm:$0xff]
    %v430 = vld [vmem:[#allocation2 + $0x18] sm:$0xff]
    %v431 = vld [vmem:[#allocation2 + $0x20] sm:$0xff]
    %v432 = vld [vmem:[#allocation2 + $0x28] sm:$0xff]
    %v433 = vld [vmem:[#allocation2 + $0x30] sm:$0xff]
    %v434 = vld [vmem:[#allocation2 + $0x38] sm:$0xff]
    %v435 = vld [vmem:[#allocation2 + $0x40] sm:$0xff]
    %v436 = vld [vmem:[#allocation2 + $0x48] sm:$0xff]
    %v437 = vld [vmem:[#allocation2 + $0x50] sm:$0xff]
    %v438 = vld [vmem:[#allocation2 + $0x58] sm:$0xff]
    %v439 = vld [vmem:[#allocation2 + $0x60] sm:$0xff]
    %v440 = vld [vmem:[#allocation2 + $0x68] sm:$0xff]
    %v441 = vld [vmem:[#allocation2 + $0x70] sm:$0xff]
    %v442 = vld [vmem:[#allocation2 + $0x78] sm:$0xff]
    %v443 = vld [vmem:[#allocation2 + $0x80] sm:$0xff]
    %v444 = vld [vmem:[#allocation2 + $0x88] sm:$0xff]
    %v445 = vld [vmem:[#allocation2 + $0x90] sm:$0xff]
    %v446 = vld [vmem:[#allocation2 + $0x98] sm:$0xff]
    %v447 = vld [vmem:[#allocation2 + $0xa0] sm:$0xff]
    %v448 = vld [vmem:[#allocation2 + $0xa8] sm:$0xff]
    %v449 = vld [vmem:[#allocation2 + $0xb0] sm:$0xff]
    %v450 = vld [vmem:[#allocation2 + $0xb8] sm:$0xff]
    %v451 = vld [vmem:[#allocation2 + $0xc0] sm:$0xff]
    %v452 = vld [vmem:[#allocation2 + $0xc8] sm:$0xff]
    %v453 = vld [vmem:[#allocation2 + $0xd0] sm:$0xff]
    %v454 = vld [vmem:[#allocation2 + $0xd8] sm:$0xff]
    %v455 = vld [vmem:[#allocation2 + $0xe0] sm:$0xff]
    %v456 = vld [vmem:[#allocation2 + $0xe8] sm:$0xff]
    %v457 = vld [vmem:[#allocation2 + $0xf0] sm:$0xff]
    %v458 = vld [vmem:[#allocation2 + $0xf8] sm:$0xff]
    %v459 = vpack.c.bf16 %v427, %v427
    %v460 = vpack.c.bf16 %v428, %v428
    %v461 = vpack.c.bf16 %v429, %v429
    %v462 = vpack.c.bf16 %v430, %v430
    %v463 = vpack.c.bf16 %v431, %v431
    %v464 = vpack.c.bf16 %v432, %v432
    %v465 = vpack.c.bf16 %v433, %v433
    %v466 = vpack.c.bf16 %v434, %v434
    %v467 = vpack.c.bf16 %v435, %v435
    %v468 = vpack.c.bf16 %v436, %v436
    %v469 = vpack.c.bf16 %v437, %v437
    %v470 = vpack.c.bf16 %v438, %v438
    %v471 = vpack.c.bf16 %v439, %v439
    %v472 = vpack.c.bf16 %v440, %v440
    %v473 = vpack.c.bf16 %v441, %v441
    %v474 = vpack.c.bf16 %v442, %v442
    %v475 = vpack.c.bf16 %v443, %v443
    %v476 = vpack.c.bf16 %v444, %v444
    %v477 = vpack.c.bf16 %v445, %v445
    %v478 = vpack.c.bf16 %v446, %v446
    %v479 = vpack.c.bf16 %v447, %v447
    %v480 = vpack.c.bf16 %v448, %v448
    %v481 = vpack.c.bf16 %v449, %v449
    %v482 = vpack.c.bf16 %v450, %v450
    %v483 = vpack.c.bf16 %v451, %v451
    %v484 = vpack.c.bf16 %v452, %v452
    %v485 = vpack.c.bf16 %v453, %v453
    %v486 = vpack.c.bf16 %v454, %v454
    %v487 = vpack.c.bf16 %v455, %v455
    %v488 = vpack.c.bf16 %v456, %v456
    %v489 = vpack.c.bf16 %v457, %v457
    %v490 = vpack.c.bf16 %v458, %v458
    %491 = vst [vmem:[%s2] sm:$0xf] %v459
    %492 = vst [vmem:[%s2 + $0x4] sm:$0xf] %v460
    %493 = vst [vmem:[%s2 + $0x8] sm:$0xf] %v461
    %494 = vst [vmem:[%s2 + $0xc] sm:$0xf] %v462
    %495 = vst [vmem:[%s2 + $0x10] sm:$0xf] %v463
    %496 = vst [vmem:[%s2 + $0x14] sm:$0xf] %v464
    %497 = vst [vmem:[%s2 + $0x18] sm:$0xf] %v465
    %498 = vst [vmem:[%s2 + $0x1c] sm:$0xf] %v466
    %499 = vst [vmem:[%s2 + $0x20] sm:$0xf] %v467
    %500 = vst [vmem:[%s2 + $0x24] sm:$0xf] %v468
    %501 = vst [vmem:[%s2 + $0x28] sm:$0xf] %v469
    %502 = vst [vmem:[%s2 + $0x2c] sm:$0xf] %v470
    %503 = vst [vmem:[%s2 + $0x30] sm:$0xf] %v471
    %504 = vst [vmem:[%s2 + $0x34] sm:$0xf] %v472
    %505 = vst [vmem:[%s2 + $0x38] sm:$0xf] %v473
    %506 = vst [vmem:[%s2 + $0x3c] sm:$0xf] %v474
    %507 = vst [vmem:[%s2 + $0x40] sm:$0xf] %v475
    %508 = vst [vmem:[%s2 + $0x44] sm:$0xf] %v476
    %509 = vst [vmem:[%s2 + $0x48] sm:$0xf] %v477
    %510 = vst [vmem:[%s2 + $0x4c] sm:$0xf] %v478
    %511 = vst [vmem:[%s2 + $0x50] sm:$0xf] %v479
    %512 = vst [vmem:[%s2 + $0x54] sm:$0xf] %v480
    %513 = vst [vmem:[%s2 + $0x58] sm:$0xf] %v481
    %514 = vst [vmem:[%s2 + $0x5c] sm:$0xf] %v482
    %515 = vst [vmem:[%s2 + $0x60] sm:$0xf] %v483
    %516 = vst [vmem:[%s2 + $0x64] sm:$0xf] %v484
    %517 = vst [vmem:[%s2 + $0x68] sm:$0xf] %v485
    %518 = vst [vmem:[%s2 + $0x6c] sm:$0xf] %v486
    %519 = vst [vmem:[%s2 + $0x70] sm:$0xf] %v487
    %520 = vst [vmem:[%s2 + $0x74] sm:$0xf] %v488
    %521 = vst [vmem:[%s2 + $0x78] sm:$0xf] %v489
    %522 = vst [vmem:[%s2 + $0x7c] sm:$0xf] %v490
  $region17: #{graph_convolution.2} parent=0 // pred_fallthru
    _
  // Predicated region
  $region18: #{graph_convolution.2} parent=0 // pred_check
    _
  $region19: #{graph_convolution.2} parent=0 // pred_check_branch
    %524 = sbr.rel (0) target = $region21
  $region20: #{graph_convolution.2} parent=0 // pred_region
    _
  $region21: #{graph_convolution.2} parent=0 // pred_fallthru
    _
  // Predicated region
  $region22: #{graph_convolution.2} parent=0 // pred_check
    _
  $region23: #{graph_convolution.2} parent=0 // pred_check_branch
    %526 = sbr.rel (0) target = $region25
  $region24: #{graph_convolution.2} parent=0 // pred_region
    _
  $region25: #{graph_convolution.2} parent=0 // pred_fallthru
    _

</llo_original>
